<compile_context>
chip_gen: v7x
topology: tpu7x:2x2x1
jax: 0.10.0
libtpu: 0.0.40
codegen_flags: <defaults>
</compile_context>

<pallas_src>
import math
import functools

import jax
import jax.numpy as jnp
from jax.experimental import pallas as pl
from jax.experimental.pallas import tpu as pltpu


# ------------------------------ linear kernel -------------------------------

def _linear_kernel(x_ref, w_ref, b_ref, o_ref):
    # x: (tm, K), w: (K, tn), b: (1, tn)  ->  o: (tm, tn)
    acc = jnp.dot(x_ref[...], w_ref[...], preferred_element_type=jnp.float32)
    o_ref[...] = (acc + b_ref[...]).astype(o_ref.dtype)


def linear_pallas(x, w, b, *, tm_max=256, tn_max=512):
    """out = x @ w + b ;  x: (M, K), w: (K, N), b: (N,).

    Tiled over M and N so the BlockSpec pipeline overlaps DMA and compute and
    both TensorCores (v7x) can be used.  K is kept untiled (K == d_model here,
    which fits comfortably in VMEM).
    """
    M, K = x.shape
    K2, N = w.shape
    assert K == K2
    tm = M if M <= tm_max else tm_max
    tn = N if N <= tn_max else tn_max
    b2 = b.reshape(1, N)
    grid = (pl.cdiv(M, tm), pl.cdiv(N, tn))
    return pl.pallas_call(
        _linear_kernel,
        out_shape=jax.ShapeDtypeStruct((M, N), x.dtype),
        grid=grid,
        in_specs=[
            pl.BlockSpec((tm, K), lambda i, j: (i, 0)),
            pl.BlockSpec((K, tn), lambda i, j: (0, j)),
            pl.BlockSpec((1, tn), lambda i, j: (0, j)),
        ],
        out_specs=pl.BlockSpec((tm, tn), lambda i, j: (i, j)),
        compiler_params=pltpu.CompilerParams(
            dimension_semantics=("parallel", "parallel")),
    )(x, w, b2)


# ----------------------------- attention kernel -----------------------------

def _attention_kernel(q_ref, k_ref, v_ref, o_ref, *, num_heads, head_dim):
    # q/k/v blocks: (1, S, D) with head-major column layout (scale already
    # folded into the Q weights).  o block: (1, H, S, hd).
    q = q_ref[0]                               # (S, D)
    k = k_ref[0]
    v = v_ref[0]
    for h in range(num_heads):
        lo = h * head_dim
        hi = lo + head_dim
        qh = q[:, lo:hi]                       # (S, hd)
        kh = k[:, lo:hi]
        vh = v[:, lo:hi]
        # q @ k^T without an explicit transpose: contract last dims of both.
        s = jax.lax.dot_general(
            qh, kh, (((1,), (1,)), ((), ())),
            preferred_element_type=jnp.float32)            # (S, S)
        m = jnp.max(s, axis=-1, keepdims=True)
        p = jnp.exp(s - m)
        denom = jnp.sum(p, axis=-1, keepdims=True)         # (S, 1)
        acc = jnp.dot(p, vh, preferred_element_type=jnp.float32)   # (S, hd)
        # Deferred normalization: scale the (S, hd) tile, not the (S, S) one;
        # approx reciprocal runs on the EUP slot.
        oh = acc * pl.reciprocal(denom, approx=True)
        o_ref[0, h] = oh.astype(o_ref.dtype)


def attention_pallas(qkv_packed, num_heads):
    """Scaled-dot-product attention over a packed (B, S, 3D) [Q|K|V] tensor.

    Returns (B, H, S, hd) — the same memory layout PyTorch's module reshapes
    directly into (B, S, D).
    """
    B, S, threeD = qkv_packed.shape
    D = threeD // 3
    hd = D // num_heads
    kernel = functools.partial(_attention_kernel,
                               num_heads=num_heads, head_dim=hd)
    return pl.pallas_call(
        kernel,
        out_shape=jax.ShapeDtypeStruct((B, num_heads, S, hd), qkv_packed.dtype),
        grid=(B,),
        in_specs=[
            pl.BlockSpec((1, S, D), lambda b: (b, 0, 0)),   # Q columns
            pl.BlockSpec((1, S, D), lambda b: (b, 0, 1)),   # K columns
            pl.BlockSpec((1, S, D), lambda b: (b, 0, 2)),   # V columns
        ],
        out_specs=pl.BlockSpec((1, num_heads, S, hd), lambda b: (b, 0, 0, 0)),
        compiler_params=pltpu.CompilerParams(
            dimension_semantics=("parallel",)),
    )(qkv_packed, qkv_packed, qkv_packed)


# ------------------------- parameter pre-processing -------------------------

def _pack_qkv_params(w_qkv, b_qkv, num_heads, head_dim):
    """Permute qkv_layer columns into head-major [Q | K | V] order and fold the
    1/sqrt(head_dim) attention scale into the Q columns.  Host-side, once."""
    D = num_heads * head_dim
    d = jnp.arange(head_dim)
    q_cols = jnp.concatenate([h * 3 * head_dim + d for h in range(num_heads)])
    perm = jnp.concatenate([q_cols, q_cols + head_dim, q_cols + 2 * head_dim])
    scale = 1.0 / math.sqrt(head_dim)
    col_scale = jnp.concatenate([
        jnp.full((D,), scale, dtype=w_qkv.dtype),
        jnp.ones((2 * D,), dtype=w_qkv.dtype),
    ])
    return w_qkv[:, perm] * col_scale[None, :], b_qkv[perm] * col_scale


# ------------------------- MultiHeadAttention fwd ---------------------------

def multi_head_attention(x, params, num_heads):
    """Forward pass matching the PyTorch MultiHeadAttention module (mask=None)."""
    B, S, D = x.shape
    hd = D // num_heads

    # qkv = self.qkv_layer(x)  (columns pre-permuted to [Q|K|V] head-major,
    # with the attention scale folded into Q).
    w_qkv, b_qkv = _pack_qkv_params(params["w_qkv"], params["b_qkv"],
                                    num_heads, hd)
    qkv = linear_pallas(x.reshape(B * S, D), w_qkv, b_qkv)          # (B*S, 3D)
    qkv = qkv.reshape(B, S, 3 * D)

    # scaled_dot_product over all heads of each batch, directly from the
    # packed qkv tensor (no transpose / split / extra HBM copy).
    values = attention_pallas(qkv, num_heads)                       # (B, H, S, hd)

    # torch: values.reshape(batch, seq, d_model) directly on the (B, H, S, hd)
    # tensor (no transpose back) -> free contiguous reinterpretation here.
    values = values.reshape(B, S, D)

    # out = self.linear_layer(values)
    out = linear_pallas(values.reshape(B * S, D),
                        params["w_out"], params["b_out"])
    return out.reshape(B, S, D)


# ------------------------------ reference (JAX) -----------------------------

def multi_head_attention_ref(x, params, num_heads):
    B, S, D = x.shape
    hd = D // num_heads
    qkv = x @ params["w_qkv"] + params["b_qkv"]
    qkv = qkv.reshape(B, S, num_heads, 3 * hd).transpose(0, 2, 1, 3)
    q, k, v = jnp.split(qkv, 3, axis=-1)
    s = jnp.einsum("bhqd,bhkd->bhqk", q, k) / math.sqrt(hd)
    attn = jax.nn.softmax(s, axis=-1)
    vals = jnp.einsum("bhqk,bhkd->bhqd", attn, v)
    # Matches torch: reshape the (B, H, S, hd) tensor directly.
    vals = vals.reshape(B, S, D)
    return vals @ params["w_out"] + params["b_out"]


# ----------------------------------- main -----------------------------------

if __name__ == "__main__":
    # Small shapes consistent with the module (num_heads=8, d_model % heads == 0).
    B, S, D, H = 2, 32, 256, 8

    key = jax.random.PRNGKey(0)
    kx, k1, k2, k3, k4 = jax.random.split(key, 5)

    x = jax.random.normal(kx, (B, S, D), dtype=jnp.float32)

    # Weights stored as (in_features, out_features) so out = x @ W + b.
    params = {
        "w_qkv": 0.02 * jax.random.normal(k1, (D, 3 * D), dtype=jnp.float32),
        "b_qkv": 0.02 * jax.random.normal(k2, (3 * D,), dtype=jnp.float32),
        "w_out": 0.02 * jax.random.normal(k3, (D, D), dtype=jnp.float32),
        "b_out": 0.02 * jax.random.normal(k4, (D,), dtype=jnp.float32),
    }

    out = multi_head_attention(x, params, num_heads=H)
    out = jax.block_until_ready(out)

    ref = multi_head_attention_ref(x, params, num_heads=H)
    assert out.shape == (B, S, D)
    # Tolerance covers the EUP approximate reciprocal in the softmax epilogue
    # and default TPU matmul precision differences between kernel and XLA ref.
    assert jnp.allclose(out, ref, atol=1e-3, rtol=1e-3), "mismatch vs reference"

    print("KERNEL_OK")
</pallas_src>

<mosaic_0001>
module attributes {stable_mosaic.version = 11 : i64} {
  func.func @_linear_kernel(%arg0: i32, %arg1: i32, %arg2: memref<64x256xf32, #tpu.memory_space<vmem>>, %arg3: memref<256x512xf32, #tpu.memory_space<vmem>>, %arg4: memref<1x512xf32, #tpu.memory_space<vmem>>, %arg5: memref<64x512xf32, #tpu.memory_space<vmem>>) attributes {dimension_semantics = [#tpu.dimension_semantics<parallel>, #tpu.dimension_semantics<parallel>], iteration_bounds = array<i64: 1, 2>, scalar_prefetch = 0 : i64, scratch_operands = 0 : i64, tpu.core_type = #tpu.core_type<tc>, window_params = [{transform_indices = @transform_0, window_bounds = array<i64: 64, 256>}, {transform_indices = @transform_1, window_bounds = array<i64: 256, 512>}, {transform_indices = @transform_2, window_bounds = array<i64: 1, 512>}, {transform_indices = @transform_3, window_bounds = array<i64: 64, 512>}]} {
    %c0 = arith.constant 0 : index
    %c0_0 = arith.constant 0 : index
    %0 = vector.load %arg2[%c0, %c0_0] : memref<64x256xf32, #tpu.memory_space<vmem>>, vector<64x256xf32>
    %c0_1 = arith.constant 0 : index
    %c0_2 = arith.constant 0 : index
    %1 = vector.load %arg3[%c0_1, %c0_2] : memref<256x512xf32, #tpu.memory_space<vmem>>, vector<256x512xf32>
    %cst = arith.constant dense<0.000000e+00> : vector<64x512xf32>
    %2 = tpu.matmul %0, %1, %cst {dimension_numbers = #tpu.dot_dimension_numbers<[1], [0], [0], [1], [0, 0, 1, 1], [], []>} : vector<64x256xf32>, vector<256x512xf32>, vector<64x512xf32> -> vector<64x512xf32>
    %c0_3 = arith.constant 0 : index
    %c0_4 = arith.constant 0 : index
    %3 = vector.load %arg4[%c0_3, %c0_4] : memref<1x512xf32, #tpu.memory_space<vmem>>, vector<1x512xf32>
    %4 = vector.broadcast %3 : vector<1x512xf32> to vector<64x512xf32>
    %5 = arith.addf %2, %4 : vector<64x512xf32>
    %c0_5 = arith.constant 0 : index
    %c0_6 = arith.constant 0 : index
    %6 = vector.load %arg5[%c0_5, %c0_6] : memref<64x512xf32, #tpu.memory_space<vmem>>, vector<64x512xf32>
    tpu.vector_store %arg5[%c0_5, %c0_6], %5 {strides = array<i32>} : memref<64x512xf32, #tpu.memory_space<vmem>>, vector<64x512xf32>,
    return
  }
  func.func @transform_0(%arg0: i32, %arg1: i32) -> (i32, i32) {
    %c0_i32 = arith.constant 0 : i32
    %c0_i32_0 = arith.constant 0 : i32
    return %arg0, %c0_i32 : i32, i32
  }
  func.func @transform_1(%arg0: i32, %arg1: i32) -> (i32, i32) {
    %c0_i32 = arith.constant 0 : i32
    %c0_i32_0 = arith.constant 0 : i32
    return %c0_i32, %arg1 : i32, i32
  }
  func.func @transform_2(%arg0: i32, %arg1: i32) -> (i32, i32) {
    %c0_i32 = arith.constant 0 : i32
    %c0_i32_0 = arith.constant 0 : i32
    return %c0_i32, %arg1 : i32, i32
  }
  func.func @transform_3(%arg0: i32, %arg1: i32) -> (i32, i32) {
    %c0_i32 = arith.constant 0 : i32
    return %arg0, %arg1 : i32, i32
  }
}

</mosaic_0001>

<llo_original>
// kernel: tpu_custom_call.1
$region0: #{tpu_custom_call.1}
  #allocation0 [shape = 'u32[]', space=smem, size = 0x4, offset = 0x4, fixed_abs, tag = 'smem constant byte address 0x4 - core index']
  #allocation1 [shape = 'u32[144,128]{1,0:T(1,128)}', space=vmem, size = 0x12000, scoped, tag = 'internal scratch']
  %s0 = inlined_call_operand.hbm [shape: f32[64,256], index: 0, kind: input, shape index: {}]
  %s1 = inlined_call_operand.hbm [shape: f32[256,768], index: 1, kind: input, shape index: {}]
  %s2 = inlined_call_operand.vmem [shape: f32[1,768], index: 2, kind: input, shape index: {}]
  %s3 = inlined_call_operand.hbm [shape: f32[64,768], index: 3, kind: output, shape index: {}]
  %s4 = sld [smem:[#allocation0]]
  $region53: #{tpu_custom_call.1} parent=0
    _
  %s6 = ssub.s32 1, %s4
  %s7 = scalar_select 0, %s6, %s4
  $region1: #{tpu_custom_call.1} parent=0
    #allocation2 [shape = 'u8[65536]{0}', space=vmem, size = 0x10000, scoped, tag = 'input window, operand 0, single buffered']
    #allocation3 [shape = 's32[2]{0}', space=sflag, size = 0x8, scoped, tag = 'scoped memory for tpu_custom_call.1']
    #allocation4 [shape = 's32[2]{0}', space=sflag, size = 0x8, scoped, tag = 'scoped memory for tpu_custom_call.1']
    #allocation5 [shape = 'u8[1048576]{0}', space=vmem, size = 0x100000, scoped, tag = 'input window, operand 1']
    #allocation6 [shape = 's32[2]{0}', space=sflag, size = 0x8, scoped, tag = 'scoped memory for tpu_custom_call.1']
    #allocation7 [shape = 'u8[262144]{0}', space=vmem, size = 0x40000, scoped, tag = 'output window, operand 0']
    %8 = vsyncpa [#allocation3], 0
    %9 = vsyncpa [#allocation6], 0
    %s10 = scalar_lea.sflag [#allocation6], 1
    %11 = vsyncpa %s10, 0
    %12 = vsyncpa [#allocation4], 0
    %s13 = scalar_lea.sflag [#allocation4], 1
    %14 = vsyncpa %s13, 0
    loop: start=0, step=1, limit=4
    $region2: #{tpu_custom_call.1} parent=1 // loop_pre_header
      _
    $region3: #{tpu_custom_call.1} parent=1 // loop_header
      %s16 = sphi 0, %s20
      %p17 = scmp.ge.s32.totalorder %s16, 4
      %s23 = sphi 0, %s35
      %s24 = sphi 0, %s31
      %s25 = sphi 0, %s23
      %s26 = sphi 0, %s24
      %s27 = sphi 0, %s25
      %s28 = sphi 0, %s26
      %s38 = sphi 0, %s40
      %s41 = sphi 0, %s38
      %s42 = sphi 0, %s41
      %s58 = sphi 0, %s42
      %s64 = sphi 0, %s66
      %s67 = sphi 0, %s64
      %s68 = sphi 0, %s67
      %s84 = sphi 0, %s68
      %s90 = sphi 0, %s92
      %s93 = sphi 0, %s90
      %s94 = sphi 0, %s93
      %s110 = sphi 0, %s94
      %s118 = sphi 0, %s120
      %s121 = sphi 0, %s118
      %s122 = sphi 0, %s121
      %s138 = sphi 0, %s122
    $region4: #{tpu_custom_call.1} parent=1 // loop_header_branch
      %19 = sbr.rel (%p17) target = $region8
    $region5: #{tpu_custom_call.1} parent=1 // loop_body
      %s21 = ssub.s32 %s16, 1
      %s22 = ssub.s32 %s16, 2
      %s29 = sadd.s32 1, %s24
      %p30 = scmp.ge.s32.totalorder %s29, 2
      %s31 = scalar_select %p30, 0, %s29
      %s32 = sadd.s32 1, %s23
      %s33 = scalar_select %p30, %s32, %s23
      %p34 = scmp.ge.s32.totalorder %s33, 1
      %s35 = scalar_select %p34, 0, %s33
      %s36 = ssub.s32 %s23, %s35
      %p37 = scmp.eq.s32.totalorder %s36, 0
      %s39 = sadd.s32 %s38, 1
      %s40 = scalar_select %p37, %s38, %s39
      %p43 = pneg %p37
      %p44 = scmp.eq.s32.totalorder %s16, 1
      %p45 = por %p43, %p44
      %p46 = scmp.ne.s32.totalorder %s38, %s41
      %p47 = scmp.eq.s32.totalorder %s16, 0
      %p48 = por %p46, %p47
      %p49 = scmp.ne.s32.totalorder %s38, %s41
      %p50 = scmp.eq.s32.totalorder %s21, 1
      %p51 = por %p49, %p50
      %p52 = scmp.ne.s32.totalorder %s41, %s42
      %p53 = scmp.eq.s32.totalorder %s21, 0
      %p54 = por %p52, %p53
      %p55 = scmp.ne.s32.totalorder %s41, %s42
      %p56 = scmp.eq.s32.totalorder %s22, 1
      %p57 = por %p55, %p56
      %p59 = scmp.ne.s32.totalorder %s42, %s58
      %p60 = scmp.eq.s32.totalorder %s22, 0
      %p61 = por %p59, %p60
      %s62 = ssub.s32 %s24, %s31
      %p63 = scmp.eq.s32.totalorder %s62, 0
      %s65 = sadd.s32 %s64, 1
      %s66 = scalar_select %p63, %s64, %s65
      %p69 = pneg %p63
      %p70 = scmp.eq.s32.totalorder %s16, 1
      %p71 = por %p69, %p70
      %p72 = scmp.ne.s32.totalorder %s64, %s67
      %p73 = scmp.eq.s32.totalorder %s16, 0
      %p74 = por %p72, %p73
      %p75 = scmp.ne.s32.totalorder %s64, %s67
      %p76 = scmp.eq.s32.totalorder %s21, 1
      %p77 = por %p75, %p76
      %p78 = scmp.ne.s32.totalorder %s67, %s68
      %p79 = scmp.eq.s32.totalorder %s21, 0
      %p80 = por %p78, %p79
      %p81 = scmp.ne.s32.totalorder %s67, %s68
      %p82 = scmp.eq.s32.totalorder %s22, 1
      %p83 = por %p81, %p82
      %p85 = scmp.ne.s32.totalorder %s68, %s84
      %p86 = scmp.eq.s32.totalorder %s22, 0
      %p87 = por %p85, %p86
      %s88 = ssub.s32 %s24, %s31
      %p89 = scmp.eq.s32.totalorder %s88, 0
      %s91 = sadd.s32 %s90, 1
      %s92 = scalar_select %p89, %s90, %s91
      %p95 = pneg %p89
      %p96 = scmp.eq.s32.totalorder %s16, 1
      %p97 = por %p95, %p96
      %p98 = scmp.ne.s32.totalorder %s90, %s93
      %p99 = scmp.eq.s32.totalorder %s16, 0
      %p100 = por %p98, %p99
      %p101 = scmp.ne.s32.totalorder %s90, %s93
      %p102 = scmp.eq.s32.totalorder %s21, 1
      %p103 = por %p101, %p102
      %p104 = scmp.ne.s32.totalorder %s93, %s94
      %p105 = scmp.eq.s32.totalorder %s21, 0
      %p106 = por %p104, %p105
      %p107 = scmp.ne.s32.totalorder %s93, %s94
      %p108 = scmp.eq.s32.totalorder %s22, 1
      %p109 = por %p107, %p108
      %p111 = scmp.ne.s32.totalorder %s94, %s110
      %p112 = scmp.eq.s32.totalorder %s22, 0
      %p113 = por %p111, %p112
      %s114 = ssub.s32 %s23, %s35
      %s115 = ssub.s32 %s24, %s31
      %s116 = sor.u32 %s114, %s115
      %p117 = scmp.eq.s32.totalorder %s116, 0
      %s119 = sadd.s32 %s118, 1
      %s120 = scalar_select %p117, %s118, %s119
      %p123 = pneg %p117
      %p124 = scmp.eq.s32.totalorder %s16, 1
      %p125 = por %p123, %p124
      %p126 = scmp.ne.s32.totalorder %s118, %s121
      %p127 = scmp.eq.s32.totalorder %s16, 0
      %p128 = por %p126, %p127
      %p129 = scmp.ne.s32.totalorder %s118, %s121
      %p130 = scmp.eq.s32.totalorder %s21, 1
      %p131 = por %p129, %p130
      %p132 = scmp.ne.s32.totalorder %s121, %s122
      %p133 = scmp.eq.s32.totalorder %s21, 0
      %p134 = por %p132, %p133
      %p135 = scmp.ne.s32.totalorder %s121, %s122
      %p136 = scmp.eq.s32.totalorder %s22, 1
      %p137 = por %p135, %p136
      %p139 = scmp.ne.s32.totalorder %s122, %s138
      %p140 = scmp.eq.s32.totalorder %s22, 0
      %p141 = por %p139, %p140
      %p142 = scmp.le.s32.totalorder 1, %s16
      %p143 = scmp.lt.s32.totalorder %s16, 3
      %p144 = pnand %p142, %p143
      %p145 = pneg %p144
      // Predicated region
      $region9: #{tpu_custom_call.1} parent=5 // pred_check
        _
      $region10: #{tpu_custom_call.1} parent=5 // pred_check_branch
        %147 = sbr.rel (%p144) target = $region12
      $region11: #{tpu_custom_call.1} parent=5 // pred_region
        %s148 = ssub.s32 %s16, 1
        // Predicated region
        $region13: #{tpu_custom_call.1} parent=11 // pred_check
          %p149 = pneg %p54
        $region14: #{tpu_custom_call.1} parent=11 // pred_check_branch
          %151 = sbr.rel (%p149) target = $region16
        $region15: #{tpu_custom_call.1} parent=11 // pred_region
          %s152 = smul.u32 8, %s25
          %s154 = ssub.s32 2048, 2048
          %155 = vsyncadd [#allocation3], %s154
          %s156 = smul.addr %s152, 2
          %s157 = smul.addr %s156, 128
          %s158 = scalar_lea.hbm %s0, %s157
          %s159 = sshll.u32 [#allocation2], 4
          %s160 = int_to_ptr.vmem [resolvable:$true] %s159
          %165 = dma.hbm_to_vmem [thread:$0]  %s158, 2048, %s160, [#allocation3], 256, 256, 16
        $region16: #{tpu_custom_call.1} parent=11 // pred_fallthru
          _
      $region12: #{tpu_custom_call.1} parent=5 // pred_fallthru
        _
      %p166 = scmp.lt.s32.totalorder %s16, 2
      // Predicated region
      $region17: #{tpu_custom_call.1} parent=5 // pred_check
        %p167 = pneg %p166
      $region18: #{tpu_custom_call.1} parent=5 // pred_check_branch
        %169 = sbr.rel (%p167) target = $region20
      $region19: #{tpu_custom_call.1} parent=5 // pred_region
        // Predicated region
        $region21: #{tpu_custom_call.1} parent=19 // pred_check
          %p170 = pneg %p74
        $region22: #{tpu_custom_call.1} parent=19 // pred_check_branch
          %172 = sbr.rel (%p170) target = $region24
        $region23: #{tpu_custom_call.1} parent=19 // pred_region
          %s173 = sand.u32 %s64, 1
          %s174 = scalar_lea.sflag [#allocation6], %s173
          %s175 = sand.u32 %s64, 1
          %s176 = smul.addr %s175, 1024
          %s177 = scalar_lea.vmem [#allocation5], %s176
          %s178 = smul.u32 4, %s24
          %s179 = ssub.s32 6, %s178
          %p180 = scmp.lt.s32.totalorder %s179, 4
          %s181 = scalar_select %p180, %s179, 4
          %s182 = smul.u32 4096, %s181
          %s184 = ssub.s32 16384, %s182
          %185 = vsyncadd %s174, %s184
          %p186 = scmp.ne.s32.totalorder 0, %s182
          %s187 = smul.addr %s178, 128
          %s188 = scalar_lea.hbm %s1, %s187
          %s189 = smul.u32 %s181, 8
          %s190 = smul.u32 %s189, 32
          %s191 = sshll.u32 %s177, 4
          %s192 = int_to_ptr.vmem [resolvable:$true] %s191
          %s193 = sshll.u32 %s190, 4
          %197 = dma.hbm_to_vmem [thread:$0]  (%p186), %s188, %s193, %s192, %s174, 768, 512, %s189
        $region24: #{tpu_custom_call.1} parent=19 // pred_fallthru
          _
        // Predicated region
        $region25: #{tpu_custom_call.1} parent=19 // pred_check
          %p198 = pneg %p100
        $region26: #{tpu_custom_call.1} parent=19 // pred_check_branch
          %200 = sbr.rel (%p198) target = $region28
        $region27: #{tpu_custom_call.1} parent=19 // pred_region
          %s201 = smul.u32 4, %s24
          %s202 = ssub.s32 6, %s201
          %p203 = scmp.lt.s32.totalorder %s202, 4
          %s204 = scalar_select %p203, %s202, 4
          %s205 = smul.u32 16, %s204
          %p206 = scmp.lt.s32.totalorder %s201, 5
          %s207 = scalar_select %p206, %s201, 5
          %s208 = scalar_lea.vmem %s2, %s207
          %s209 = smul.u32 4, %s24
          %s210 = ssub.s32 6, %s209
          %p211 = scmp.lt.s32.totalorder %s210, 4
          %s212 = scalar_select %p211, %s210, 4
          %s213 = smul.u32 16, %s212
        $region28: #{tpu_custom_call.1} parent=19 // pred_fallthru
          _
      $region20: #{tpu_custom_call.1} parent=5 // pred_fallthru
        _
      %p214 = scmp.le.s32.totalorder 1, %s16
      %p215 = scmp.lt.s32.totalorder %s16, 3
      %p216 = pnand %p214, %p215
      %p217 = pneg %p216
      // Predicated region
      $region29: #{tpu_custom_call.1} parent=5 // pred_check
        _
      $region30: #{tpu_custom_call.1} parent=5 // pred_check_branch
        %219 = sbr.rel (%p216) target = $region32
      $region31: #{tpu_custom_call.1} parent=5 // pred_region
        %s220 = ssub.s32 %s16, 1
        // Predicated region
        $region33: #{tpu_custom_call.1} parent=31 // pred_check
          %p221 = pneg %p54
        $region34: #{tpu_custom_call.1} parent=31 // pred_check_branch
          %223 = sbr.rel (%p221) target = $region36
        $region35: #{tpu_custom_call.1} parent=31 // pred_region
          %224 = dma.done [#allocation3], 2048
        $region36: #{tpu_custom_call.1} parent=31 // pred_fallthru
          _
        %s225 = sand.u32 %s67, 1
        %s226 = scalar_lea.sflag [#allocation6], %s225
        %s227 = sand.u32 %s67, 1
        %s228 = smul.addr %s227, 1024
        %s229 = scalar_lea.vmem [#allocation5], %s228
        // Predicated region
        $region37: #{tpu_custom_call.1} parent=31 // pred_check
          %p230 = pneg %p80
        $region38: #{tpu_custom_call.1} parent=31 // pred_check_branch
          %232 = sbr.rel (%p230) target = $region40
        $region39: #{tpu_custom_call.1} parent=31 // pred_region
          %233 = dma.done %s226, 16384
        $region40: #{tpu_custom_call.1} parent=31 // pred_fallthru
          _
        %p234 = pneg %p54
        %p235 = pneg %p51
        %s236 = sand.u32 %s67, 1
        %s237 = scalar_lea.sflag [#allocation6], %s236
        %s238 = sand.u32 %s67, 1
        %s239 = smul.addr %s238, 1024
        %s240 = scalar_lea.vmem [#allocation5], %s239
        %p241 = pneg %p80
        %p242 = pneg %p77
        %s243 = smul.u32 4, %s26
        %s244 = ssub.s32 6, %s243
        %p245 = scmp.lt.s32.totalorder %s244, 4
        %s246 = scalar_select %p245, %s244, 4
        %s247 = smul.u32 16, %s246
        %p248 = scmp.lt.s32.totalorder %s243, 5
        %s249 = scalar_select %p248, %s243, 5
        %s250 = scalar_lea.vmem %s2, %s249
        %p251 = pneg %p106
        %p252 = pneg %p103
        %p253 = pneg %p134
        %p254 = pneg %p131
        %s255 = sand.u32 %s121, 1
        %s256 = scalar_lea.sflag [#allocation4], %s255
        %s257 = sand.u32 %s121, 1
        %s258 = smul.addr %s257, 256
        %s259 = scalar_lea.vmem [#allocation7], %s258
        %s260 = smul.u32 8, %s25
        %s261 = smul.u32 4, %s26
        %s262 = ssub.s32 6, %s261
        %p263 = scmp.lt.s32.totalorder %s262, 4
        %s264 = scalar_select %p263, %s262, 4
        %s265 = smul.u32 4096, %s264
        %s266 = smul.u32 4, %s26
        %s267 = ssub.s32 6, %s266
        %p268 = scmp.lt.s32.totalorder %s267, 4
        %s269 = scalar_select %p268, %s267, 4
        %s270 = smul.u32 16, %s269
        %p271 = scmp.lt.s32.totalorder %s266, 5
        %s272 = scalar_select %p271, %s266, 5
        %s273 = scalar_lea.vmem %s2, %s272
        %s274 = smul.u32 4, %s26
        %s275 = ssub.s32 6, %s274
        %p276 = scmp.lt.s32.totalorder %s275, 4
        %s277 = scalar_select %p276, %s275, 4
        %s278 = smul.u32 16, %s277
        %s279 = smul.u32 8, %s25
        %s280 = smul.u32 4, %s26
        %s281 = ssub.s32 6, %s280
        %p282 = scmp.lt.s32.totalorder %s281, 4
        %s283 = scalar_select %p282, %s281, 4
        %s284 = smul.u32 1024, %s283
        %v285 = vld [vmem:[#allocation2] sm:$0xff]
        %v286 = vld [vmem:[#allocation2 + $0x8] sm:$0xff]
        %v287 = vld [vmem:[#allocation2 + $0x10] sm:$0xff]
        %v288 = vld [vmem:[#allocation2 + $0x18] sm:$0xff]
        %v289 = vld [vmem:[#allocation2 + $0x20] sm:$0xff]
        %v290 = vld [vmem:[#allocation2 + $0x28] sm:$0xff]
        %v291 = vld [vmem:[#allocation2 + $0x30] sm:$0xff]
        %v292 = vld [vmem:[#allocation2 + $0x38] sm:$0xff]
        %v293 = vld [vmem:[#allocation2 + $0x40] sm:$0xff]
        %v294 = vld [vmem:[#allocation2 + $0x48] sm:$0xff]
        %v295 = vld [vmem:[#allocation2 + $0x50] sm:$0xff]
        %v296 = vld [vmem:[#allocation2 + $0x58] sm:$0xff]
        %v297 = vld [vmem:[#allocation2 + $0x60] sm:$0xff]
        %v298 = vld [vmem:[#allocation2 + $0x68] sm:$0xff]
        %v299 = vld [vmem:[#allocation2 + $0x70] sm:$0xff]
        %v300 = vld [vmem:[#allocation2 + $0x78] sm:$0xff]
        %v301 = vld [vmem:[%s229] sm:$0xff]
        %v302 = vld [vmem:[%s229 + $0x8] sm:$0xff]
        %v303 = vld [vmem:[%s229 + $0x10] sm:$0xff]
        %v304 = vld [vmem:[%s229 + $0x18] sm:$0xff]
        %v305 = vld [vmem:[%s229 + $0x20] sm:$0xff]
        %v306 = vld [vmem:[%s229 + $0x28] sm:$0xff]
        %v307 = vld [vmem:[%s229 + $0x30] sm:$0xff]
        %v308 = vld [vmem:[%s229 + $0x38] sm:$0xff]
        %v309 = vld [vmem:[%s229 + $0x40] sm:$0xff]
        %v310 = vld [vmem:[%s229 + $0x48] sm:$0xff]
        %v311 = vld [vmem:[%s229 + $0x50] sm:$0xff]
        %v312 = vld [vmem:[%s229 + $0x58] sm:$0xff]
        %v313 = vld [vmem:[%s229 + $0x60] sm:$0xff]
        %v314 = vld [vmem:[%s229 + $0x68] sm:$0xff]
        %v315 = vld [vmem:[%s229 + $0x70] sm:$0xff]
        %v316 = vld [vmem:[%s229 + $0x78] sm:$0xff]
        %v317 = vld [vmem:[%s229 + $0x80] sm:$0xff]
        %v318 = vld [vmem:[%s229 + $0x88] sm:$0xff]
        %v319 = vld [vmem:[%s229 + $0x90] sm:$0xff]
        %v320 = vld [vmem:[%s229 + $0x98] sm:$0xff]
        %v321 = vld [vmem:[%s229 + $0xa0] sm:$0xff]
        %v322 = vld [vmem:[%s229 + $0xa8] sm:$0xff]
        %v323 = vld [vmem:[%s229 + $0xb0] sm:$0xff]
        %v324 = vld [vmem:[%s229 + $0xb8] sm:$0xff]
        %v325 = vld [vmem:[%s229 + $0xc0] sm:$0xff]
        %v326 = vld [vmem:[%s229 + $0xc8] sm:$0xff]
        %v327 = vld [vmem:[%s229 + $0xd0] sm:$0xff]
        %v328 = vld [vmem:[%s229 + $0xd8] sm:$0xff]
        %v329 = vld [vmem:[%s229 + $0xe0] sm:$0xff]
        %v330 = vld [vmem:[%s229 + $0xe8] sm:$0xff]
        %v331 = vld [vmem:[%s229 + $0xf0] sm:$0xff]
        %v332 = vld [vmem:[%s229 + $0xf8] sm:$0xff]
        %v333 = vld [vmem:[%s229 + $0x100] sm:$0xff]
        %v334 = vld [vmem:[%s229 + $0x108] sm:$0xff]
        %v335 = vld [vmem:[%s229 + $0x110] sm:$0xff]
        %v336 = vld [vmem:[%s229 + $0x118] sm:$0xff]
        %v337 = vld [vmem:[%s229 + $0x120] sm:$0xff]
        %v338 = vld [vmem:[%s229 + $0x128] sm:$0xff]
        %v339 = vld [vmem:[%s229 + $0x130] sm:$0xff]
        %v340 = vld [vmem:[%s229 + $0x138] sm:$0xff]
        %v341 = vld [vmem:[%s229 + $0x140] sm:$0xff]
        %v342 = vld [vmem:[%s229 + $0x148] sm:$0xff]
        %v343 = vld [vmem:[%s229 + $0x150] sm:$0xff]
        %v344 = vld [vmem:[%s229 + $0x158] sm:$0xff]
        %v345 = vld [vmem:[%s229 + $0x160] sm:$0xff]
        %v346 = vld [vmem:[%s229 + $0x168] sm:$0xff]
        %v347 = vld [vmem:[%s229 + $0x170] sm:$0xff]
        %v348 = vld [vmem:[%s229 + $0x178] sm:$0xff]
        %v349 = vld [vmem:[%s229 + $0x180] sm:$0xff]
        %v350 = vld [vmem:[%s229 + $0x188] sm:$0xff]
        %v351 = vld [vmem:[%s229 + $0x190] sm:$0xff]
        %v352 = vld [vmem:[%s229 + $0x198] sm:$0xff]
        %v353 = vld [vmem:[%s229 + $0x1a0] sm:$0xff]
        %v354 = vld [vmem:[%s229 + $0x1a8] sm:$0xff]
        %v355 = vld [vmem:[%s229 + $0x1b0] sm:$0xff]
        %v356 = vld [vmem:[%s229 + $0x1b8] sm:$0xff]
        %v357 = vld [vmem:[%s229 + $0x1c0] sm:$0xff]
        %v358 = vld [vmem:[%s229 + $0x1c8] sm:$0xff]
        %v359 = vld [vmem:[%s229 + $0x1d0] sm:$0xff]
        %v360 = vld [vmem:[%s229 + $0x1d8] sm:$0xff]
        %v361 = vld [vmem:[%s229 + $0x1e0] sm:$0xff]
        %v362 = vld [vmem:[%s229 + $0x1e8] sm:$0xff]
        %v363 = vld [vmem:[%s229 + $0x1f0] sm:$0xff]
        %v364 = vld [vmem:[%s229 + $0x1f8] sm:$0xff]
        %v365 = vld [vmem:[%s229 + $0x200] sm:$0xff]
        %v366 = vld [vmem:[%s229 + $0x208] sm:$0xff]
        %v367 = vld [vmem:[%s229 + $0x210] sm:$0xff]
        %v368 = vld [vmem:[%s229 + $0x218] sm:$0xff]
        %v369 = vld [vmem:[%s229 + $0x220] sm:$0xff]
        %v370 = vld [vmem:[%s229 + $0x228] sm:$0xff]
        %v371 = vld [vmem:[%s229 + $0x230] sm:$0xff]
        %v372 = vld [vmem:[%s229 + $0x238] sm:$0xff]
        %v373 = vld [vmem:[%s229 + $0x240] sm:$0xff]
        %v374 = vld [vmem:[%s229 + $0x248] sm:$0xff]
        %v375 = vld [vmem:[%s229 + $0x250] sm:$0xff]
        %v376 = vld [vmem:[%s229 + $0x258] sm:$0xff]
        %v377 = vld [vmem:[%s229 + $0x260] sm:$0xff]
        %v378 = vld [vmem:[%s229 + $0x268] sm:$0xff]
        %v379 = vld [vmem:[%s229 + $0x270] sm:$0xff]
        %v380 = vld [vmem:[%s229 + $0x278] sm:$0xff]
        %v381 = vld [vmem:[%s229 + $0x280] sm:$0xff]
        %v382 = vld [vmem:[%s229 + $0x288] sm:$0xff]
        %v383 = vld [vmem:[%s229 + $0x290] sm:$0xff]
        %v384 = vld [vmem:[%s229 + $0x298] sm:$0xff]
        %v385 = vld [vmem:[%s229 + $0x2a0] sm:$0xff]
        %v386 = vld [vmem:[%s229 + $0x2a8] sm:$0xff]
        %v387 = vld [vmem:[%s229 + $0x2b0] sm:$0xff]
        %v388 = vld [vmem:[%s229 + $0x2b8] sm:$0xff]
        %v389 = vld [vmem:[%s229 + $0x2c0] sm:$0xff]
        %v390 = vld [vmem:[%s229 + $0x2c8] sm:$0xff]
        %v391 = vld [vmem:[%s229 + $0x2d0] sm:$0xff]
        %v392 = vld [vmem:[%s229 + $0x2d8] sm:$0xff]
        %v393 = vld [vmem:[%s229 + $0x2e0] sm:$0xff]
        %v394 = vld [vmem:[%s229 + $0x2e8] sm:$0xff]
        %v395 = vld [vmem:[%s229 + $0x2f0] sm:$0xff]
        %v396 = vld [vmem:[%s229 + $0x2f8] sm:$0xff]
        %v397 = vld [vmem:[%s229 + $0x300] sm:$0xff]
        %v398 = vld [vmem:[%s229 + $0x308] sm:$0xff]
        %v399 = vld [vmem:[%s229 + $0x310] sm:$0xff]
        %v400 = vld [vmem:[%s229 + $0x318] sm:$0xff]
        %v401 = vld [vmem:[%s229 + $0x320] sm:$0xff]
        %v402 = vld [vmem:[%s229 + $0x328] sm:$0xff]
        %v403 = vld [vmem:[%s229 + $0x330] sm:$0xff]
        %v404 = vld [vmem:[%s229 + $0x338] sm:$0xff]
        %v405 = vld [vmem:[%s229 + $0x340] sm:$0xff]
        %v406 = vld [vmem:[%s229 + $0x348] sm:$0xff]
        %v407 = vld [vmem:[%s229 + $0x350] sm:$0xff]
        %v408 = vld [vmem:[%s229 + $0x358] sm:$0xff]
        %v409 = vld [vmem:[%s229 + $0x360] sm:$0xff]
        %v410 = vld [vmem:[%s229 + $0x368] sm:$0xff]
        %v411 = vld [vmem:[%s229 + $0x370] sm:$0xff]
        %v412 = vld [vmem:[%s229 + $0x378] sm:$0xff]
        %v413 = vld [vmem:[%s229 + $0x380] sm:$0xff]
        %v414 = vld [vmem:[%s229 + $0x388] sm:$0xff]
        %v415 = vld [vmem:[%s229 + $0x390] sm:$0xff]
        %v416 = vld [vmem:[%s229 + $0x398] sm:$0xff]
        %v417 = vld [vmem:[%s229 + $0x3a0] sm:$0xff]
        %v418 = vld [vmem:[%s229 + $0x3a8] sm:$0xff]
        %v419 = vld [vmem:[%s229 + $0x3b0] sm:$0xff]
        %v420 = vld [vmem:[%s229 + $0x3b8] sm:$0xff]
        %v421 = vld [vmem:[%s229 + $0x3c0] sm:$0xff]
        %v422 = vld [vmem:[%s229 + $0x3c8] sm:$0xff]
        %v423 = vld [vmem:[%s229 + $0x3d0] sm:$0xff]
        %v424 = vld [vmem:[%s229 + $0x3d8] sm:$0xff]
        %v425 = vld [vmem:[%s229 + $0x3e0] sm:$0xff]
        %v426 = vld [vmem:[%s229 + $0x3e8] sm:$0xff]
        %v427 = vld [vmem:[%s229 + $0x3f0] sm:$0xff]
        %v428 = vld [vmem:[%s229 + $0x3f8] sm:$0xff]
        %v429 = vld [vmem:[%s273] sm:$0xf]
        %v431 = vlaneseq
        %v432 = vshrl.u32 %v431, 7
        %v433 = vsub.s32 0, %v432
        %v434 = vrot.slane %v429, %v433
        %v435 = vlaneseq
        %v436 = vshrl.u32 %v435, 7
        %v437 = vsub.s32 1, %v436
        %v438 = vrot.slane %v429, %v437
        %v439 = vlaneseq
        %v440 = vshrl.u32 %v439, 7
        %v441 = vsub.s32 2, %v440
        %v442 = vrot.slane %v429, %v441
        %v443 = vlaneseq
        %v444 = vshrl.u32 %v443, 7
        %v445 = vsub.s32 3, %v444
        %v446 = vrot.slane %v429, %v445
        %451 = vmatprep.subr.mxu0 %v302
        %452 = vmatpush1.msra.mxu0 %v301
        %453 = vmatprep.subr.mxu0 %v306
        %454 = vmatpush1.msra.mxu0 %v305
        %455 = vmatprep.subr.mxu0 %v310
        %456 = vmatpush1.msra.mxu0 %v309
        %457 = vmatprep.subr.mxu0 %v314
        %458 = vmatpush1.msra.mxu0 %v313
        %459 = vmatprep.subr.mxu0 %v318
        %460 = vmatpush1.msra.mxu0 %v317
        %461 = vmatprep.subr.mxu0 %v322
        %462 = vmatpush1.msra.mxu0 %v321
        %463 = vmatprep.subr.mxu0 %v326
        %464 = vmatpush1.msra.mxu0 %v325
        %465 = vmatprep.subr.mxu0 %v330
        %466 = vmatpush1.msra.mxu0 %v329
        %467 = vmatprep.subr.mxu0 %v334
        %468 = vmatpush1.msra.mxu0 %v333
        %469 = vmatprep.subr.mxu0 %v338
        %470 = vmatpush1.msra.mxu0 %v337
        %471 = vmatprep.subr.mxu0 %v342
        %472 = vmatpush1.msra.mxu0 %v341
        %473 = vmatprep.subr.mxu0 %v346
        %474 = vmatpush1.msra.mxu0 %v345
        %475 = vmatprep.subr.mxu0 %v350
        %476 = vmatpush1.msra.mxu0 %v349
        %477 = vmatprep.subr.mxu0 %v354
        %478 = vmatpush1.msra.mxu0 %v353
        %479 = vmatprep.subr.mxu0 %v358
        %480 = vmatpush1.msra.mxu0 %v357
        %481 = vmatprep.subr.mxu0 %v362
        %482 = vmatpush1.msra.mxu0 %v361
        %483 = vmatprep.subr.mxu0 %v366
        %484 = vmatpush1.msra.mxu0 %v365
        %485 = vmatprep.subr.mxu0 %v370
        %486 = vmatpush1.msra.mxu0 %v369
        %487 = vmatprep.subr.mxu0 %v374
        %488 = vmatpush1.msra.mxu0 %v373
        %489 = vmatprep.subr.mxu0 %v378
        %490 = vmatpush1.msra.mxu0 %v377
        %491 = vmatprep.subr.mxu0 %v382
        %492 = vmatpush1.msra.mxu0 %v381
        %493 = vmatprep.subr.mxu0 %v386
        %494 = vmatpush1.msra.mxu0 %v385
        %495 = vmatprep.subr.mxu0 %v390
        %496 = vmatpush1.msra.mxu0 %v389
        %497 = vmatprep.subr.mxu0 %v394
        %498 = vmatpush1.msra.mxu0 %v393
        %499 = vmatprep.subr.mxu0 %v398
        %500 = vmatpush1.msra.mxu0 %v397
        %501 = vmatprep.subr.mxu0 %v402
        %502 = vmatpush1.msra.mxu0 %v401
        %503 = vmatprep.subr.mxu0 %v406
        %504 = vmatpush1.msra.mxu0 %v405
        %505 = vmatprep.subr.mxu0 %v410
        %506 = vmatpush1.msra.mxu0 %v409
        %507 = vmatprep.subr.mxu0 %v414
        %508 = vmatpush1.msra.mxu0 %v413
        %509 = vmatprep.subr.mxu0 %v418
        %510 = vmatpush1.msra.mxu0 %v417
        %511 = vmatprep.subr.mxu0 %v422
        %512 = vmatpush1.msra.mxu0 %v421
        %513 = vmatprep.subr.mxu0 %v426
        %514 = vmatpush1.msra.mxu0 %v425
        %515 = vmatprep.mubr.f32.mxu0 %v286
        %516 = vmatmul.mubr.f32.gmra.mrb[0].mxu0 %v285
        %v517 = vpop.f32.mrb[0].mxu0
        %v518 = vadd.f32 %v434, %v517
        %v519 = vpop.f32.mrb[0].mxu0
        %v520 = vadd.f32 %v438, %v519
        %521 = vmatprep.mubr.f32.mxu0 %v288
        %522 = vmatmul.mubr.f32.gmra.mrb[0].mxu0 %v287
        %v523 = vpop.f32.mrb[0].mxu0
        %v524 = vadd.f32 %v434, %v523
        %v525 = vpop.f32.mrb[0].mxu0
        %v526 = vadd.f32 %v438, %v525
        %527 = vmatprep.mubr.f32.mxu0 %v290
        %528 = vmatmul.mubr.f32.gmra.mrb[0].mxu0 %v289
        %v529 = vpop.f32.mrb[0].mxu0
        %v530 = vadd.f32 %v434, %v529
        %v531 = vpop.f32.mrb[0].mxu0
        %v532 = vadd.f32 %v438, %v531
        %533 = vmatprep.mubr.f32.mxu0 %v292
        %534 = vmatmul.mubr.f32.gmra.mrb[0].mxu0 %v291
        %v535 = vpop.f32.mrb[0].mxu0
        %v536 = vadd.f32 %v434, %v535
        %v537 = vpop.f32.mrb[0].mxu0
        %v538 = vadd.f32 %v438, %v537
        %539 = vmatprep.mubr.f32.mxu0 %v294
        %540 = vmatmul.mubr.f32.gmra.mrb[0].mxu0 %v293
        %v541 = vpop.f32.mrb[0].mxu0
        %v542 = vadd.f32 %v434, %v541
        %v543 = vpop.f32.mrb[0].mxu0
        %v544 = vadd.f32 %v438, %v543
        %545 = vmatprep.mubr.f32.mxu0 %v296
        %546 = vmatmul.mubr.f32.gmra.mrb[0].mxu0 %v295
        %v547 = vpop.f32.mrb[0].mxu0
        %v548 = vadd.f32 %v434, %v547
        %v549 = vpop.f32.mrb[0].mxu0
        %v550 = vadd.f32 %v438, %v549
        %551 = vmatprep.mubr.f32.mxu0 %v298
        %552 = vmatmul.mubr.f32.gmra.mrb[0].mxu0 %v297
        %v553 = vpop.f32.mrb[0].mxu0
        %v554 = vadd.f32 %v434, %v553
        %v555 = vpop.f32.mrb[0].mxu0
        %v556 = vadd.f32 %v438, %v555
        %557 = vmatprep.mubr.f32.mxu0 %v300
        %558 = vmatmul.mubr.f32.gmra.mrb[0].mxu0 %v299
        %v559 = vpop.f32.mrb[0].mxu0
        %v560 = vadd.f32 %v434, %v559
        %v561 = vpop.f32.mrb[0].mxu0
        %v562 = vadd.f32 %v438, %v561
        %563 = vdwg.mxu0
        %564 = vmatprep.subr.mxu0 %v304
        %565 = vmatpush1.msra.mxu0 %v303
        %566 = vmatprep.subr.mxu0 %v308
        %567 = vmatpush1.msra.mxu0 %v307
        %568 = vmatprep.subr.mxu0 %v312
        %569 = vmatpush1.msra.mxu0 %v311
        %570 = vmatprep.subr.mxu0 %v316
        %571 = vmatpush1.msra.mxu0 %v315
        %572 = vmatprep.subr.mxu0 %v320
        %573 = vmatpush1.msra.mxu0 %v319
        %574 = vmatprep.subr.mxu0 %v324
        %575 = vmatpush1.msra.mxu0 %v323
        %576 = vmatprep.subr.mxu0 %v328
        %577 = vmatpush1.msra.mxu0 %v327
        %578 = vmatprep.subr.mxu0 %v332
        %579 = vmatpush1.msra.mxu0 %v331
        %580 = vmatprep.subr.mxu0 %v336
        %581 = vmatpush1.msra.mxu0 %v335
        %582 = vmatprep.subr.mxu0 %v340
        %583 = vmatpush1.msra.mxu0 %v339
        %584 = vmatprep.subr.mxu0 %v344
        %585 = vmatpush1.msra.mxu0 %v343
        %586 = vmatprep.subr.mxu0 %v348
        %587 = vmatpush1.msra.mxu0 %v347
        %588 = vmatprep.subr.mxu0 %v352
        %589 = vmatpush1.msra.mxu0 %v351
        %590 = vmatprep.subr.mxu0 %v356
        %591 = vmatpush1.msra.mxu0 %v355
        %592 = vmatprep.subr.mxu0 %v360
        %593 = vmatpush1.msra.mxu0 %v359
        %594 = vmatprep.subr.mxu0 %v364
        %595 = vmatpush1.msra.mxu0 %v363
        %596 = vmatprep.subr.mxu0 %v368
        %597 = vmatpush1.msra.mxu0 %v367
        %598 = vmatprep.subr.mxu0 %v372
        %599 = vmatpush1.msra.mxu0 %v371
        %600 = vmatprep.subr.mxu0 %v376
        %601 = vmatpush1.msra.mxu0 %v375
        %602 = vmatprep.subr.mxu0 %v380
        %603 = vmatpush1.msra.mxu0 %v379
        %604 = vmatprep.subr.mxu0 %v384
        %605 = vmatpush1.msra.mxu0 %v383
        %606 = vmatprep.subr.mxu0 %v388
        %607 = vmatpush1.msra.mxu0 %v387
        %608 = vmatprep.subr.mxu0 %v392
        %609 = vmatpush1.msra.mxu0 %v391
        %610 = vmatprep.subr.mxu0 %v396
        %611 = vmatpush1.msra.mxu0 %v395
        %612 = vmatprep.subr.mxu0 %v400
        %613 = vmatpush1.msra.mxu0 %v399
        %614 = vmatprep.subr.mxu0 %v404
        %615 = vmatpush1.msra.mxu0 %v403
        %616 = vmatprep.subr.mxu0 %v408
        %617 = vmatpush1.msra.mxu0 %v407
        %618 = vmatprep.subr.mxu0 %v412
        %619 = vmatpush1.msra.mxu0 %v411
        %620 = vmatprep.subr.mxu0 %v416
        %621 = vmatpush1.msra.mxu0 %v415
        %622 = vmatprep.subr.mxu0 %v420
        %623 = vmatpush1.msra.mxu0 %v419
        %624 = vmatprep.subr.mxu0 %v424
        %625 = vmatpush1.msra.mxu0 %v423
        %626 = vmatprep.subr.mxu0 %v428
        %627 = vmatpush1.msra.mxu0 %v427
        %628 = vmatprep.mubr.f32.mxu0 %v286
        %629 = vmatmul.mubr.f32.gmra.mrb[0].mxu0 %v285
        %v630 = vpop.f32.mrb[0].mxu0
        %v631 = vadd.f32 %v442, %v630
        %v632 = vpop.f32.mrb[0].mxu0
        %v633 = vadd.f32 %v446, %v632
        %634 = vmatprep.mubr.f32.mxu0 %v288
        %635 = vmatmul.mubr.f32.gmra.mrb[0].mxu0 %v287
        %v636 = vpop.f32.mrb[0].mxu0
        %v637 = vadd.f32 %v442, %v636
        %v638 = vpop.f32.mrb[0].mxu0
        %v639 = vadd.f32 %v446, %v638
        %640 = vmatprep.mubr.f32.mxu0 %v290
        %641 = vmatmul.mubr.f32.gmra.mrb[0].mxu0 %v289
        %v642 = vpop.f32.mrb[0].mxu0
        %v643 = vadd.f32 %v442, %v642
        %v644 = vpop.f32.mrb[0].mxu0
        %v645 = vadd.f32 %v446, %v644
        %646 = vmatprep.mubr.f32.mxu0 %v292
        %647 = vmatmul.mubr.f32.gmra.mrb[0].mxu0 %v291
        %v648 = vpop.f32.mrb[0].mxu0
        %v649 = vadd.f32 %v442, %v648
        %v650 = vpop.f32.mrb[0].mxu0
        %v651 = vadd.f32 %v446, %v650
        %652 = vmatprep.mubr.f32.mxu0 %v294
        %653 = vmatmul.mubr.f32.gmra.mrb[0].mxu0 %v293
        %v654 = vpop.f32.mrb[0].mxu0
        %v655 = vadd.f32 %v442, %v654
        %v656 = vpop.f32.mrb[0].mxu0
        %v657 = vadd.f32 %v446, %v656
        %658 = vmatprep.mubr.f32.mxu0 %v296
        %659 = vmatmul.mubr.f32.gmra.mrb[0].mxu0 %v295
        %v660 = vpop.f32.mrb[0].mxu0
        %v661 = vadd.f32 %v442, %v660
        %v662 = vpop.f32.mrb[0].mxu0
        %v663 = vadd.f32 %v446, %v662
        %664 = vmatprep.mubr.f32.mxu0 %v298
        %665 = vmatmul.mubr.f32.gmra.mrb[0].mxu0 %v297
        %v666 = vpop.f32.mrb[0].mxu0
        %v667 = vadd.f32 %v442, %v666
        %v668 = vpop.f32.mrb[0].mxu0
        %v669 = vadd.f32 %v446, %v668
        %670 = vmatprep.mubr.f32.mxu0 %v300
        %671 = vmatmul.mubr.f32.gmra.mrb[0].mxu0 %v299
        %v672 = vpop.f32.mrb[0].mxu0
        %v673 = vadd.f32 %v442, %v672
        %v674 = vpop.f32.mrb[0].mxu0
        %v675 = vadd.f32 %v446, %v674
        %676 = vdwg.mxu0
        %677 = vst [vmem:[%s259] sm:$0xff] %v518
        %678 = vst [vmem:[%s259 + $0x8] sm:$0xff] %v520
        %679 = vst [vmem:[%s259 + $0x10] sm:$0xff] %v631
        %680 = vst [vmem:[%s259 + $0x18] sm:$0xff] %v633
        %681 = vst [vmem:[%s259 + $0x20] sm:$0xff] %v524
        %682 = vst [vmem:[%s259 + $0x28] sm:$0xff] %v526
        %683 = vst [vmem:[%s259 + $0x30] sm:$0xff] %v637
        %684 = vst [vmem:[%s259 + $0x38] sm:$0xff] %v639
        %685 = vst [vmem:[%s259 + $0x40] sm:$0xff] %v530
        %686 = vst [vmem:[%s259 + $0x48] sm:$0xff] %v532
        %687 = vst [vmem:[%s259 + $0x50] sm:$0xff] %v643
        %688 = vst [vmem:[%s259 + $0x58] sm:$0xff] %v645
        %689 = vst [vmem:[%s259 + $0x60] sm:$0xff] %v536
        %690 = vst [vmem:[%s259 + $0x68] sm:$0xff] %v538
        %691 = vst [vmem:[%s259 + $0x70] sm:$0xff] %v649
        %692 = vst [vmem:[%s259 + $0x78] sm:$0xff] %v651
        %693 = vst [vmem:[%s259 + $0x80] sm:$0xff] %v542
        %694 = vst [vmem:[%s259 + $0x88] sm:$0xff] %v544
        %695 = vst [vmem:[%s259 + $0x90] sm:$0xff] %v655
        %696 = vst [vmem:[%s259 + $0x98] sm:$0xff] %v657
        %697 = vst [vmem:[%s259 + $0xa0] sm:$0xff] %v548
        %698 = vst [vmem:[%s259 + $0xa8] sm:$0xff] %v550
        %699 = vst [vmem:[%s259 + $0xb0] sm:$0xff] %v661
        %700 = vst [vmem:[%s259 + $0xb8] sm:$0xff] %v663
        %701 = vst [vmem:[%s259 + $0xc0] sm:$0xff] %v554
        %702 = vst [vmem:[%s259 + $0xc8] sm:$0xff] %v556
        %703 = vst [vmem:[%s259 + $0xd0] sm:$0xff] %v667
        %704 = vst [vmem:[%s259 + $0xd8] sm:$0xff] %v669
        %705 = vst [vmem:[%s259 + $0xe0] sm:$0xff] %v560
        %706 = vst [vmem:[%s259 + $0xe8] sm:$0xff] %v562
        %707 = vst [vmem:[%s259 + $0xf0] sm:$0xff] %v673
        %708 = vst [vmem:[%s259 + $0xf8] sm:$0xff] %v675
        %s709 = sand.u32 %s121, 1
        %s710 = scalar_lea.sflag [#allocation4], %s709
        %s711 = sand.u32 %s121, 1
        %s712 = smul.addr %s711, 256
        %s713 = scalar_lea.vmem [#allocation7], %s712
        // Predicated region
        $region41: #{tpu_custom_call.1} parent=31 // pred_check
          %p714 = pneg %p131
        $region42: #{tpu_custom_call.1} parent=31 // pred_check_branch
          %716 = sbr.rel (%p714) target = $region44
        $region43: #{tpu_custom_call.1} parent=31 // pred_region
          %s717 = smul.u32 8, %s25
          %s718 = smul.u32 4, %s26
          %s719 = ssub.s32 6, %s718
          %p720 = scmp.lt.s32.totalorder %s719, 4
          %s721 = scalar_select %p720, %s719, 4
          %s722 = smul.u32 1024, %s721
          %s724 = ssub.s32 4096, %s722
          %725 = vsyncadd %s710, %s724
          %p726 = scmp.ne.s32.totalorder 0, %s722
          %s727 = smul.addr %s717, 6
          %s728 = sadd.s32 %s718, %s727
          %s729 = smul.addr %s728, 128
          %s730 = scalar_lea.hbm %s3, %s729
          %s731 = smul.u32 %s721, 8
          %s732 = smul.u32 %s731, 8
          %s733 = sshll.u32 %s713, 4
          %s734 = int_to_ptr.vmem [resolvable:$true] %s733
          %s735 = sshll.u32 %s732, 4
          %739 = dma.vmem_to_hbm [thread:$0]  (%p726), %s734, %s735, %s730, %s710, 512, 768, %s731
        $region44: #{tpu_custom_call.1} parent=31 // pred_fallthru
          _
      $region32: #{tpu_custom_call.1} parent=5 // pred_fallthru
        _
      %p740 = scmp.le.s32.totalorder 2, %s16
      // Predicated region
      $region45: #{tpu_custom_call.1} parent=5 // pred_check
        %p741 = pneg %p740
      $region46: #{tpu_custom_call.1} parent=5 // pred_check_branch
        %743 = sbr.rel (%p741) target = $region48
      $region47: #{tpu_custom_call.1} parent=5 // pred_region
        %s744 = ssub.s32 %s16, 2
        // Predicated region
        $region49: #{tpu_custom_call.1} parent=47 // pred_check
          %p745 = pneg %p137
        $region50: #{tpu_custom_call.1} parent=47 // pred_check_branch
          %747 = sbr.rel (%p745) target = $region52
        $region51: #{tpu_custom_call.1} parent=47 // pred_region
          %s748 = sand.u32 %s122, 1
          %s749 = scalar_lea.sflag [#allocation4], %s748
          %s750 = sand.u32 %s122, 1
          %s751 = smul.addr %s750, 256
          %s752 = scalar_lea.vmem [#allocation7], %s751
          %753 = dma.done %s749, 4096
        $region52: #{tpu_custom_call.1} parent=47 // pred_fallthru
          _
      $region48: #{tpu_custom_call.1} parent=5 // pred_fallthru
        _
    $region6: #{tpu_custom_call.1} parent=1 // loop_footer
      %s20 = sadd.s32 1, %s16
    $region7: #{tpu_custom_call.1} parent=1 // loop_footer_branch
      %15 = sbr.rel target = $region3
    $region8: #{tpu_custom_call.1} parent=1 // loop_exit
      _
    %754 = vsyncpa [#allocation3], 1
    %s755 = scalar_lea.sflag [#allocation3], 1
    %756 = vsyncpa %s755, 1
    %757 = vsyncpa [#allocation6], 1
    %s758 = scalar_lea.sflag [#allocation6], 1
    %759 = vsyncpa %s758, 1
    %760 = vsyncpa [#allocation4], 1
    %s761 = scalar_lea.sflag [#allocation4], 1
    %762 = vsyncpa %s761, 1

</llo_original>
